<compile_context>
chip_gen: v7x
topology: tpu7x:2x2x1
jax: 0.10.0
libtpu: 0.0.40
codegen_flags: <defaults>
</compile_context>

<pallas_src>
import functools
import numpy as np
import jax
import jax.numpy as jnp
from jax.experimental import pallas as pl
from jax.experimental.pallas import tpu as pltpu


# ------------------------- Gabor filter-bank setup (host-side, NumPy) -------
def gabor_kernel(frequency, sigma_x, sigma_y, theta=0.0, offset=0.0, ks=61):
    """Deterministic NumPy port of vonenet's gabor_kernel."""
    w = ks // 2
    grid_val = np.arange(-w, w + 1, dtype=np.float64)
    xg, yg = np.meshgrid(grid_val, grid_val, indexing="ij")
    rotx = xg * np.cos(theta) + yg * np.sin(theta)
    roty = -xg * np.sin(theta) + yg * np.cos(theta)
    g = np.exp(-0.5 * (rotx ** 2 / sigma_x ** 2 + roty ** 2 / sigma_y ** 2))
    g /= 2.0 * np.pi * sigma_x * sigma_y
    g *= np.cos(2.0 * np.pi * frequency * rotx + offset)
    return g.astype(np.float32)


def make_gfb_weights(sf, theta, sigx, sigy, phase, color,
                     in_channels, out_channels, ksize):
    """GFB.initialize: one gabor per output channel, placed on channel color[i]."""
    w = np.zeros((out_channels, in_channels, ksize, ksize), dtype=np.float32)
    for i in range(out_channels):
        w[i, int(color[i])] = gabor_kernel(frequency=sf[i], sigma_x=sigx[i],
                                           sigma_y=sigy[i], theta=theta[i],
                                           offset=phase[i], ks=ksize)
    return w


# ------------------------- small helpers -------------------------------------
def _round_up(x, m):
    return ((x + m - 1) // m) * m


def _choose_tm(m, target):
    # v5e/v6e have a single TensorCore: the grid is a serial loop, so prefer
    # ONE big tile for small problems instead of force-splitting.  tm_target
    # is sweepable (raise to ~1024 on v7x with its 2 TCs / 3.2 TB/s HBM, drop
    # to ~256 on v5e if VMEM-bound).  Multiple of 8 for sublane alignment.
    return min(_round_up(target, 8), _round_up(m, 8))


# ------------------------- Pallas kernels ------------------------------------
def _vone_kernel_aligned(p_ref, w_ref, o_ref, *, sc, cp):
    # p_ref : (TM, Kp) bf16
    # w_ref : (Kp, cp + ccp) bf16  [bank0 = all channels, bank1 = complex only]
    # o_ref : (TM, cp) f32
    # k_exc (simple cols) and k_exc/sqrt(2) (complex cols) are folded into w.
    s = jnp.dot(p_ref[...], w_ref[...], preferred_element_type=jnp.float32)
    s0 = s[:, :cp]                    # phase-0 bank, all channels
    s1 = s[:, cp:]                    # phase-pi/2 bank, complex channels only
    # simple cells: ReLU; lane-aligned dense slab (sc is a multiple of 128).
    o_ref[:, :sc] = jnp.maximum(s0[:, :sc], 0.0)
    # complex cells: quadrature magnitude; padded columns stay exact zeros.
    c0 = s0[:, sc:]
    o_ref[:, sc:] = jnp.sqrt(c0 * c0 + s1 * s1)
    # TODO(synk): chunk this epilogue over 128-row slabs if bundle dumps show
    # the store slot saturating at large TM on v5e.


def _vone_kernel_select(p_ref, w_ref, o_ref, *, sc, cp):
    # Fallback for channel splits that are not 128-aligned: both banks carry
    # all channels; a column-iota select keeps the store one dense vst.
    s = jnp.dot(p_ref[...], w_ref[...], preferred_element_type=jnp.float32)
    s0 = s[:, :cp]
    s1 = s[:, cp:]
    simple = jnp.maximum(s0, 0.0)                       # nn.ReLU (simple cells)
    cplx = jnp.sqrt(s0 * s0 + s1 * s1)                  # quadrature magnitude
    ch = jax.lax.broadcasted_iota(jnp.int32, s0.shape, dimension=1)
    o_ref[...] = jnp.where(ch < sc, simple, cplx)       # torch.cat((s, c), 1)


# ------------------------- Wrapper -------------------------------------------
def vone_block_forward(x, w_q0, w_q1, *, stride, simple_channels, k_exc,
                       tm_target=512):
    """x: NCHW float32.  Returns NCHW (N, out_channels, Ho, Wo) float32.

    Matches VOneBlock.forward with noise_mode=None.  k_exc must be a static
    Python number (module hyper-parameter).
    """
    N, C, H, W = x.shape
    Cout, Cin, K, _ = w_q0.shape
    assert Cin == C
    k_exc = float(k_exc)
    pad = K // 2
    Ho = (H + 2 * pad - K) // stride + 1
    Wo = (W + 2 * pad - K) // stride + 1

    if k_exc < 0:
        # noise_mode=None & static k_exc < 0: relu(k_exc * cat(relu(s0), |q|))
        # is identically zero.
        return jnp.zeros((N, Cout, Ho, Wo), x.dtype)

    M = N * Ho * Wo
    kdim = Cin * K * K
    # Pad contraction dim to 128 only when nearly free; otherwise sublane (8)
    # alignment only and let Mosaic mask the lane remainder in the matmul.
    kdim_p = _round_up(kdim, 128)
    if kdim_p > kdim + kdim // 8:
        kdim_p = _round_up(kdim, 8)
    cp = _round_up(Cout, 128)                    # lane-dense output columns
    sc = int(simple_channels)
    aligned = (sc % 128 == 0) and (0 < sc < Cout)
    ccp = (cp - sc) if aligned else cp           # width of the phase-pi/2 bank
    wtot = cp + ccp

    # --- glue: im2col in bf16, NHWC order, no transpose of the expanded slab.
    # TODO(synk): move this into the kernel (halo-row DMA, memory_space=pl.ANY).
    xb = jnp.transpose(x, (0, 2, 3, 1)).astype(jnp.bfloat16)     # NHWC, un-expanded
    xp = jnp.pad(xb, ((0, 0), (pad, pad), (pad, pad), (0, 0)))
    cols = []
    for kh in range(K):
        for kw in range(K):
            cols.append(xp[:, kh:kh + stride * (Ho - 1) + 1:stride,
                            kw:kw + stride * (Wo - 1) + 1:stride, :])
    patches = jnp.stack(cols, axis=3)            # (N, Ho, Wo, K*K, Cin): target order
    patches = patches.reshape(M, kdim)           # free reshape (already row-major)

    tm = _choose_tm(M, tm_target)
    Mp = _round_up(M, tm)
    patches = jnp.pad(patches, ((0, Mp - M), (0, kdim_p - kdim)))   # (Mp, Kp) bf16

    # --- constant fused weight: fold k_exc / (k_exc/sqrt(2)) per column.
    col_scale = jnp.where(jnp.arange(Cout) < sc, k_exc,
                          k_exc / np.sqrt(2.0)).astype(jnp.float32)
    # patches flatten as (kh, kw, c) -> weight rows must match that order.
    w0 = w_q0.astype(jnp.float32).transpose(2, 3, 1, 0).reshape(kdim, Cout) * col_scale
    w1 = w_q1.astype(jnp.float32).transpose(2, 3, 1, 0).reshape(kdim, Cout) * col_scale
    if aligned:
        w1 = w1[:, sc:]                          # phase-pi/2 bank: complex only
    b0 = jnp.pad(w0, ((0, kdim_p - kdim), (0, cp - Cout)))
    b1 = jnp.pad(w1, ((0, kdim_p - kdim), (0, ccp - w1.shape[1])))
    wcat = jnp.concatenate([b0, b1], axis=1).astype(jnp.bfloat16)   # (Kp, wtot)

    kfun = _vone_kernel_aligned if aligned else _vone_kernel_select
    kernel = functools.partial(kfun, sc=sc, cp=cp)

    # VMEM budget derived from the actual tile sizes (covers v5e's 16 MiB
    # scoped default without relying on it; stays well under v7x's 64 MiB).
    vmem_bytes = (2 * tm * kdim_p * 2        # double-buffered bf16 patch tiles
                  + kdim_p * wtot * 2        # resident weight (Buffered(1))
                  + 2 * tm * cp * 4          # double-buffered f32 output tiles
                  + 6 * tm * wtot * 4)       # matmul result + epilogue temps
    vmem_limit = int(min(max(vmem_bytes * 5 // 4, 32 << 20), 100 << 20))

    out_mat = pl.pallas_call(
        kernel,
        out_shape=jax.ShapeDtypeStruct((Mp, cp), jnp.float32),
        grid_spec=pltpu.PrefetchScalarGridSpec(
            num_scalar_prefetch=0,
            grid=(Mp // tm,),
            in_specs=[
                pl.BlockSpec((tm, kdim_p), lambda i: (i, 0)),
                # Constant block: one buffer is enough (saves a weight-sized
                # VMEM buffer vs the default double-buffering).
                pl.BlockSpec((kdim_p, wtot), lambda i: (0, 0),
                             pipeline_mode=pl.Buffered(1)),
            ],
            out_specs=pl.BlockSpec((tm, cp), lambda i: (i, 0)),
        ),
        compiler_params=pltpu.CompilerParams(
            dimension_semantics=("parallel",),
            vmem_limit_bytes=vmem_limit),
    )(patches, wcat)

    # TODO(synk): optionally emit bf16 / NHWC directly if the downstream
    # consumer accepts it; NCHW f32 kept to preserve the module contract.
    out = out_mat[:M, :Cout].reshape(N, Ho, Wo, Cout).transpose(0, 3, 1, 2)
    return out


# ------------------------- Pure-JAX references (correctness checks) ---------
def ref_forward(x, w_q0, w_q1, stride, simple_channels, k_exc):
    """Full-f32 reference of VOneBlock.forward (noise_mode=None)."""
    pad = w_q0.shape[-1] // 2
    dn = ("NCHW", "OIHW", "NCHW")
    conv = lambda w: jax.lax.conv_general_dilated(
        x, w, (stride, stride), [(pad, pad), (pad, pad)], dimension_numbers=dn,
        precision=jax.lax.Precision.HIGHEST)
    s0 = conv(w_q0)
    s1 = conv(w_q1)
    c = jnp.sqrt(s0[:, simple_channels:] ** 2 + s1[:, simple_channels:] ** 2) / np.sqrt(2.0)
    s = jax.nn.relu(s0[:, :simple_channels])
    return jax.nn.relu(k_exc * jnp.concatenate([s, c], axis=1))


def ref_forward_bf16(x, w_q0, w_q1, stride, simple_channels, k_exc):
    """Reference using the kernel's exact bf16 quantization of the input and of
    the k_exc / 1/sqrt(2)-folded weights: verifies the kernel math tightly."""
    Cout = w_q0.shape[0]
    scale = jnp.where(jnp.arange(Cout) < simple_channels, k_exc,
                      k_exc / np.sqrt(2.0)).astype(jnp.float32)[:, None, None, None]
    q = lambda a: a.astype(jnp.bfloat16).astype(jnp.float32)
    w0 = q(w_q0 * scale)
    w1 = q(w_q1 * scale)
    xq = q(x)
    pad = w_q0.shape[-1] // 2
    dn = ("NCHW", "OIHW", "NCHW")
    conv = lambda w: jax.lax.conv_general_dilated(
        xq, w, (stride, stride), [(pad, pad), (pad, pad)], dimension_numbers=dn,
        precision=jax.lax.Precision.HIGHEST)
    s0 = conv(w0)
    s1 = conv(w1)
    s = jax.nn.relu(s0[:, :simple_channels])
    c = jnp.sqrt(s0[:, simple_channels:] ** 2 + s1[:, simple_channels:] ** 2)
    return jnp.concatenate([s, c], axis=1)


# ------------------------- Main ----------------------------------------------
if __name__ == "__main__":
    def run_config(cfg_seed, simple_channels, complex_channels, ksize, stride,
                   batch, in_channels, input_size, k_exc):
        out_channels = simple_channels + complex_channels
        prng = np.random.default_rng(cfg_seed)
        sf = prng.uniform(0.05, 0.25, out_channels)
        theta = prng.uniform(0.0, np.pi, out_channels)
        sigx = prng.uniform(1.0, 4.0, out_channels)
        sigy = prng.uniform(1.0, 4.0, out_channels)
        phase = prng.uniform(0.0, 2.0 * np.pi, out_channels)
        color = prng.integers(0, in_channels, out_channels)

        w_q0 = jnp.asarray(make_gfb_weights(sf, theta, sigx, sigy, phase, color,
                                            in_channels, out_channels, ksize))
        w_q1 = jnp.asarray(make_gfb_weights(sf, theta, sigx, sigy,
                                            phase + np.pi / 2, color,
                                            in_channels, out_channels, ksize))
        x = jax.random.normal(jax.random.PRNGKey(0),
                              (batch, in_channels, input_size, input_size),
                              dtype=jnp.float32)

        fwd = jax.jit(functools.partial(vone_block_forward, stride=stride,
                                        simple_channels=simple_channels,
                                        k_exc=k_exc))
        out = jax.block_until_ready(fwd(x, w_q0, w_q1))

        # Tight check: identical bf16 quantization & folded weights -> verifies
        # the kernel's im2col ordering, fused matmul and epilogue exactly.
        ref_q = ref_forward_bf16(x, w_q0, w_q1, stride, simple_channels, k_exc)
        np.testing.assert_allclose(np.asarray(out), np.asarray(ref_q),
                                   rtol=2e-3, atol=1e-2)
        # Loose check vs. the full-f32 module reference (bounds the deliberate
        # bf16 input/weight quantization of the fast path).
        ref_f = ref_forward(x, w_q0, w_q1, stride, simple_channels, k_exc)
        np.testing.assert_allclose(np.asarray(out), np.asarray(ref_f),
                                   rtol=5e-2, atol=2.5e-1)

    # 1) Toy split (not 128-aligned) -> iota-select epilogue path.
    run_config(0, simple_channels=8, complex_channels=8, ksize=7, stride=4,
               batch=2, in_channels=3, input_size=32, k_exc=25.0)
    # 2) 128-aligned split (scaled-down VOneNet 256/256) -> two-slab epilogue
    #    with the complex-only phase-pi/2 bank.
    run_config(1, simple_channels=128, complex_channels=128, ksize=7, stride=4,
               batch=2, in_channels=3, input_size=32, k_exc=25.0)

    print("KERNEL_OK")
</pallas_src>

<mosaic_0001>
module attributes {stable_mosaic.version = 11 : i64} {
  func.func @_vone_kernel_select(%arg0: i32, %arg1: memref<128x152xbf16, #tpu.memory_space<vmem>>, %arg2: memref<152x256xbf16, #tpu.memory_space<vmem>>, %arg3: memref<128x128xf32, #tpu.memory_space<vmem>>) attributes {dimension_semantics = [#tpu.dimension_semantics<parallel>], iteration_bounds = array<i64: 1>, scalar_prefetch = 0 : i64, scratch_operands = 0 : i64, tpu.core_type = #tpu.core_type<tc>, window_params = [{transform_indices = @transform_0, window_bounds = array<i64: 128, 152>}, {pipeline_mode = #tpu.pipeline_mode<synchronous>, transform_indices = @transform_1, window_bounds = array<i64: 152, 256>}, {transform_indices = @transform_2, window_bounds = array<i64: 128, 128>}]} {
    %c0 = arith.constant 0 : index
    %c0_0 = arith.constant 0 : index
    %0 = vector.load %arg1[%c0, %c0_0] : memref<128x152xbf16, #tpu.memory_space<vmem>>, vector<128x152xbf16>
    %c0_1 = arith.constant 0 : index
    %c0_2 = arith.constant 0 : index
    %1 = vector.load %arg2[%c0_1, %c0_2] : memref<152x256xbf16, #tpu.memory_space<vmem>>, vector<152x256xbf16>
    %cst = arith.constant dense<0.000000e+00> : vector<128x256xf32>
    %2 = tpu.matmul %0, %1, %cst {dimension_numbers = #tpu.dot_dimension_numbers<[1], [0], [0], [1], [0, 0, 1, 1], [], []>} : vector<128x152xbf16>, vector<152x256xbf16>, vector<128x256xf32> -> vector<128x256xf32>
    %3 = vector.extract_strided_slice %2 {offsets = [0, 0], sizes = [128, 128], strides = [1, 1]} : vector<128x256xf32> to vector<128x128xf32>
    %4 = vector.extract_strided_slice %2 {offsets = [0, 128], sizes = [128, 128], strides = [1, 1]} : vector<128x256xf32> to vector<128x128xf32>
    %cst_3 = arith.constant 0.000000e+00 : f32
    %5 = vector.broadcast %cst_3 : f32 to vector<128x128xf32>
    %6 = arith.maximumf %3, %5 : vector<128x128xf32>
    %7 = arith.mulf %3, %3 : vector<128x128xf32>
    %8 = arith.mulf %4, %4 : vector<128x128xf32>
    %9 = arith.addf %7, %8 : vector<128x128xf32>
    %10 = math.sqrt %9 : vector<128x128xf32>
    %11 = tpu.iota {dimensions = array<i32: 1>} : vector<128x128xi32>
    %c8_i32 = arith.constant 8 : i32
    %12 = vector.broadcast %c8_i32 : i32 to vector<128x128xi32>
    %13 = arith.cmpi slt, %11, %12 : vector<128x128xi32>
    %14 = arith.select %13, %6, %10 : vector<128x128xi1>, vector<128x128xf32>
    %c0_4 = arith.constant 0 : index
    %c0_5 = arith.constant 0 : index
    %15 = vector.load %arg3[%c0_4, %c0_5] : memref<128x128xf32, #tpu.memory_space<vmem>>, vector<128x128xf32>
    tpu.vector_store %arg3[%c0_4, %c0_5], %14 {strides = array<i32>} : memref<128x128xf32, #tpu.memory_space<vmem>>, vector<128x128xf32>,
    return
  }
  func.func @transform_0(%arg0: i32) -> (i32, i32) {
    %c0_i32 = arith.constant 0 : i32
    %c0_i32_0 = arith.constant 0 : i32
    return %arg0, %c0_i32 : i32, i32
  }
  func.func @transform_1(%arg0: i32) -> (i32, i32) {
    %c0_i32 = arith.constant 0 : i32
    %c0_i32_0 = arith.constant 0 : i32
    %c0_i32_1 = arith.constant 0 : i32
    return %c0_i32, %c0_i32_0 : i32, i32
  }
  func.func @transform_2(%arg0: i32) -> (i32, i32) {
    %c0_i32 = arith.constant 0 : i32
    %c0_i32_0 = arith.constant 0 : i32
    return %arg0, %c0_i32 : i32, i32
  }
}

</mosaic_0001>

<llo_original>
// kernel: vone_block_forward.1
$region0: #{vone_block_forward.1}
  #allocation0 [shape = 'u32[]', space=smem, size = 0x4, offset = 0x4, fixed_abs, tag = 'smem constant byte address 0x4 - core index']
  #allocation1 [shape = 'u32[144,128]{1,0:T(1,128)}', space=vmem, size = 0x12000, scoped, tag = 'internal scratch']
  %s0 = inlined_call_operand.vmem [shape: bf16[128,152], index: 0, kind: input, shape index: {}]
  %s1 = inlined_call_operand.vmem [shape: bf16[152,256], index: 1, kind: input, shape index: {}]
  %s2 = inlined_call_operand.hbm [shape: f32[128,128], index: 2, kind: output, shape index: {}]
  %s3 = sld [smem:[#allocation0]]
  $region18: #{vone_block_forward.1} parent=0
    _
  %s5 = ssub.s32 1, %s3
  %s6 = scalar_select 0, %s5, %s3
  $region1: #{vone_block_forward.1} parent=0
    #allocation2 [shape = 'u8[65536]{0}', space=vmem, size = 0x10000, scoped, tag = 'output window, operand 0, single buffered']
    #allocation3 [shape = 's32[1]{0}', space=sflag, size = 0x4, scoped, tag = 'scoped memory for vone_block_forward.1']
    %7 = vsyncpa [#allocation3], 0
    // Predicated region
    $region2: #{vone_block_forward.1} parent=1 // pred_check
      _
    $region3: #{vone_block_forward.1} parent=1 // pred_check_branch
      %9 = sbr.rel (0) target = $region5
    $region4: #{vone_block_forward.1} parent=1 // pred_region
      _
    $region5: #{vone_block_forward.1} parent=1 // pred_fallthru
      _
    // Predicated region
    $region6: #{vone_block_forward.1} parent=1 // pred_check
      _
    $region7: #{vone_block_forward.1} parent=1 // pred_check_branch
      %11 = sbr.rel (0) target = $region9
    $region8: #{vone_block_forward.1} parent=1 // pred_region
      _
    $region9: #{vone_block_forward.1} parent=1 // pred_fallthru
      _
    %v13 = vld [vmem:[%s0] sm:$0xff]
    %v14 = vld [vmem:[%s0 + $0x8] sm:$0xff]
    %v15 = vld [vmem:[%s0 + $0x10] sm:$0xff]
    %v16 = vld [vmem:[%s0 + $0x18] sm:$0xff]
    %v17 = vld [vmem:[%s0 + $0x20] sm:$0xff]
    %v18 = vld [vmem:[%s0 + $0x28] sm:$0xff]
    %v19 = vld [vmem:[%s0 + $0x30] sm:$0xff]
    %v20 = vld [vmem:[%s0 + $0x38] sm:$0xff]
    %v21 = vld [vmem:[%s0 + $0x40] sm:$0xff]
    %v22 = vld [vmem:[%s0 + $0x48] sm:$0xff]
    %v23 = vld [vmem:[%s0 + $0x50] sm:$0xff]
    %v24 = vld [vmem:[%s0 + $0x58] sm:$0xff]
    %v25 = vld [vmem:[%s0 + $0x60] sm:$0xff]
    %v26 = vld [vmem:[%s0 + $0x68] sm:$0xff]
    %v27 = vld [vmem:[%s0 + $0x70] sm:$0xff]
    %v28 = vld [vmem:[%s0 + $0x78] sm:$0xff]
    %v29 = vld [vmem:[%s1] sm:$0xff]
    %v30 = vld [vmem:[%s1 + $0x8] sm:$0xff]
    %v31 = vld [vmem:[%s1 + $0x10] sm:$0xff]
    %v32 = vld [vmem:[%s1 + $0x18] sm:$0xff]
    %v33 = vld [vmem:[%s1 + $0x20] sm:$0xff]
    %v34 = vld [vmem:[%s1 + $0x28] sm:$0xff]
    %v35 = vld [vmem:[%s1 + $0x30] sm:$0xff]
    %v36 = vld [vmem:[%s1 + $0x38] sm:$0xff]
    %v37 = vld [vmem:[%s1 + $0x40] sm:$0xff]
    %v38 = vld [vmem:[%s1 + $0x48] sm:$0xff]
    %v39 = vld [vmem:[%s1 + $0x50] sm:$0xff]
    %v40 = vld [vmem:[%s1 + $0x58] sm:$0xff]
    %v41 = vld [vmem:[%s1 + $0x60] sm:$0xff]
    %v42 = vld [vmem:[%s1 + $0x68] sm:$0xff]
    %v43 = vld [vmem:[%s1 + $0x70] sm:$0xff]
    %v44 = vld [vmem:[%s1 + $0x78] sm:$0xff]
    %v45 = vld [vmem:[%s1 + $0x80] sm:$0xff]
    %v46 = vld [vmem:[%s1 + $0x88] sm:$0xff]
    %v47 = vld [vmem:[%s1 + $0x90] sm:$0xff]
    %v64 = vunpack.c.l.b16 %v13
    %v65 = vunpack.c.h.b16 %v13
    %v66 = vunpack.c.l.b16 %v14
    %v67 = vunpack.c.h.b16 %v14
    %v68 = vunpack.c.l.b16 %v15
    %v69 = vunpack.c.h.b16 %v15
    %v70 = vunpack.c.l.b16 %v16
    %v71 = vunpack.c.h.b16 %v16
    %v72 = vunpack.c.l.b16 %v17
    %v73 = vunpack.c.h.b16 %v17
    %v74 = vunpack.c.l.b16 %v18
    %v75 = vunpack.c.h.b16 %v18
    %v76 = vunpack.c.l.b16 %v19
    %v77 = vunpack.c.h.b16 %v19
    %v78 = vunpack.c.l.b16 %v20
    %v79 = vunpack.c.h.b16 %v20
    %v80 = vunpack.c.l.b16 %v21
    %v81 = vunpack.c.h.b16 %v21
    %v82 = vunpack.c.l.b16 %v22
    %v83 = vunpack.c.h.b16 %v22
    %v84 = vunpack.c.l.b16 %v23
    %v85 = vunpack.c.h.b16 %v23
    %v86 = vunpack.c.l.b16 %v24
    %v87 = vunpack.c.h.b16 %v24
    %v88 = vunpack.c.l.b16 %v25
    %v89 = vunpack.c.h.b16 %v25
    %v90 = vunpack.c.l.b16 %v26
    %v91 = vunpack.c.h.b16 %v26
    %v92 = vunpack.c.l.b16 %v27
    %v93 = vunpack.c.h.b16 %v27
    %v94 = vunpack.c.l.b16 %v28
    %v95 = vunpack.c.h.b16 %v28
    %v96 = vpack.c.b16 %v66, %v64
    %v97 = vpack.c.b16 %v67, %v65
    %v98 = vpack.c.b16 %v70, %v68
    %v99 = vpack.c.b16 %v71, %v69
    %v100 = vpack.c.b16 %v74, %v72
    %v101 = vpack.c.b16 %v75, %v73
    %v102 = vpack.c.b16 %v78, %v76
    %v103 = vpack.c.b16 %v79, %v77
    %v104 = vpack.c.b16 %v82, %v80
    %v105 = vpack.c.b16 %v83, %v81
    %v106 = vpack.c.b16 %v86, %v84
    %v107 = vpack.c.b16 %v87, %v85
    %v108 = vpack.c.b16 %v90, %v88
    %v109 = vpack.c.b16 %v91, %v89
    %v110 = vpack.c.b16 %v94, %v92
    %v111 = vpack.c.b16 %v95, %v93
    %v139 = vunpack.c.l.b16 %v29
    %v140 = vunpack.c.h.b16 %v29
    %v141 = vunpack.c.l.b16 %v30
    %v142 = vunpack.c.h.b16 %v30
    %v143 = vunpack.c.l.b16 %v31
    %v144 = vunpack.c.h.b16 %v31
    %v145 = vunpack.c.l.b16 %v32
    %v146 = vunpack.c.h.b16 %v32
    %v147 = vunpack.c.l.b16 %v33
    %v148 = vunpack.c.h.b16 %v33
    %v149 = vunpack.c.l.b16 %v34
    %v150 = vunpack.c.h.b16 %v34
    %v151 = vunpack.c.l.b16 %v35
    %v152 = vunpack.c.h.b16 %v35
    %v153 = vunpack.c.l.b16 %v36
    %v154 = vunpack.c.h.b16 %v36
    %v155 = vunpack.c.l.b16 %v37
    %v156 = vunpack.c.h.b16 %v37
    %v157 = vunpack.c.l.b16 %v38
    %v158 = vunpack.c.h.b16 %v38
    %v159 = vunpack.c.l.b16 %v39
    %v160 = vunpack.c.h.b16 %v39
    %v161 = vunpack.c.l.b16 %v40
    %v162 = vunpack.c.h.b16 %v40
    %v163 = vunpack.c.l.b16 %v41
    %v164 = vunpack.c.h.b16 %v41
    %v165 = vunpack.c.l.b16 %v42
    %v166 = vunpack.c.h.b16 %v42
    %v167 = vunpack.c.l.b16 %v43
    %v168 = vunpack.c.h.b16 %v43
    %v169 = vunpack.c.l.b16 %v44
    %v170 = vunpack.c.h.b16 %v44
    %v171 = vunpack.c.l.b16 %v45
    %v172 = vunpack.c.h.b16 %v45
    %v173 = vunpack.c.l.b16 %v46
    %v174 = vunpack.c.h.b16 %v46
    %v175 = vunpack.c.l.b16 %v47
    %v176 = vunpack.c.h.b16 %v47
    %v177 = vpack.c.b16 %v141, %v139
    %v178 = vpack.c.b16 %v142, %v140
    %v179 = vpack.c.b16 %v145, %v143
    %v180 = vpack.c.b16 %v146, %v144
    %v181 = vpack.c.b16 %v149, %v147
    %v182 = vpack.c.b16 %v150, %v148
    %v183 = vpack.c.b16 %v153, %v151
    %v184 = vpack.c.b16 %v154, %v152
    %v185 = vpack.c.b16 %v157, %v155
    %v186 = vpack.c.b16 %v158, %v156
    %v187 = vpack.c.b16 %v161, %v159
    %v188 = vpack.c.b16 %v162, %v160
    %v189 = vpack.c.b16 %v165, %v163
    %v190 = vpack.c.b16 %v166, %v164
    %v191 = vpack.c.b16 %v169, %v167
    %v192 = vpack.c.b16 %v170, %v168
    %v193 = vpack.c.b16 %v173, %v171
    %v194 = vpack.c.b16 %v174, %v172
    %v195 = vpack.c.b16 %v175, %v175
    %v196 = vpack.c.b16 %v176, %v176
    %vm215 = vcmask 195584
    %v217 = vsel %vm215, %v97, 0
    %v220 = vsel %vm215, %v99, 0
    %v223 = vsel %vm215, %v101, 0
    %v226 = vsel %vm215, %v103, 0
    %v229 = vsel %vm215, %v105, 0
    %v232 = vsel %vm215, %v107, 0
    %v235 = vsel %vm215, %v109, 0
    %v238 = vsel %vm215, %v111, 0
    %vm240 = vcmask 1043456
    %v242 = vsel %vm240, %v195, 0
    %v245 = vsel %vm240, %v196, 0
    %247 = vmatprep.subr.bf16.mxu0 %v178
    %248 = vmatpush1.bf16.msra.mxu0 %v177
    %249 = vmatprep.subr.bf16.mxu0 %v180
    %250 = vmatpush1.bf16.msra.mxu0 %v179
    %251 = vmatprep.subr.bf16.mxu0 %v182
    %252 = vmatpush1.bf16.msra.mxu0 %v181
    %253 = vmatprep.subr.bf16.mxu0 %v184
    %254 = vmatpush1.bf16.msra.mxu0 %v183
    %255 = vmatprep.subr.bf16.mxu0 %v186
    %256 = vmatpush1.bf16.msra.mxu0 %v185
    %257 = vmatprep.subr.bf16.mxu0 %v188
    %258 = vmatpush1.bf16.msra.mxu0 %v187
    %259 = vmatprep.subr.bf16.mxu0 %v190
    %260 = vmatpush1.bf16.msra.mxu0 %v189
    %261 = vmatprep.subr.bf16.mxu0 %v192
    %262 = vmatpush1.bf16.msra.mxu0 %v191
    %263 = vmatprep.subr.bf16.mxu0 %v194
    %264 = vmatpush1.bf16.msra.mxu0 %v193
    %265 = vmatprep.subr.bf16.mxu0 %v245
    %266 = vmatpush1.bf16.msra.mxu0 %v242
    %267 = vmatprep.subr.bf16.mxu0 0
    %268 = vmatpush1.bf16.msra.mxu0 0
    %269 = vmatprep.subr.bf16.mxu0 0
    %270 = vmatpush1.bf16.msra.mxu0 0
    %271 = vmatprep.subr.bf16.mxu0 0
    %272 = vmatpush1.bf16.msra.mxu0 0
    %273 = vmatprep.subr.bf16.mxu0 0
    %274 = vmatpush1.bf16.msra.mxu0 0
    %275 = vmatprep.subr.bf16.mxu0 0
    %276 = vmatpush1.bf16.msra.mxu0 0
    %277 = vmatprep.subr.bf16.mxu0 0
    %278 = vmatpush1.bf16.msra.mxu0 0
    %279 = vmatprep.mubr.bf16.mxu0 %v217
    %280 = vmatmul.mubr.bf16.gmra.mrb[0].mxu0 %v96
    %v281 = vpop.f32.mrb[0].mxu0
    %v282 = vadd.f32 0.0, %v281
    %v283 = vpop.f32.mrb[0].mxu0
    %v284 = vadd.f32 0.0, %v283
    %v285 = vpop.f32.mrb[0].mxu0
    %v286 = vadd.f32 0.0, %v285
    %v287 = vpop.f32.mrb[0].mxu0
    %v288 = vadd.f32 0.0, %v287
    %289 = vmatprep.mubr.bf16.mxu0 %v220
    %290 = vmatmul.mubr.bf16.gmra.mrb[0].mxu0 %v98
    %v291 = vpop.f32.mrb[0].mxu0
    %v292 = vadd.f32 0.0, %v291
    %v293 = vpop.f32.mrb[0].mxu0
    %v294 = vadd.f32 0.0, %v293
    %v295 = vpop.f32.mrb[0].mxu0
    %v296 = vadd.f32 0.0, %v295
    %v297 = vpop.f32.mrb[0].mxu0
    %v298 = vadd.f32 0.0, %v297
    %299 = vmatprep.mubr.bf16.mxu0 %v223
    %300 = vmatmul.mubr.bf16.gmra.mrb[0].mxu0 %v100
    %v301 = vpop.f32.mrb[0].mxu0
    %v302 = vadd.f32 0.0, %v301
    %v303 = vpop.f32.mrb[0].mxu0
    %v304 = vadd.f32 0.0, %v303
    %v305 = vpop.f32.mrb[0].mxu0
    %v306 = vadd.f32 0.0, %v305
    %v307 = vpop.f32.mrb[0].mxu0
    %v308 = vadd.f32 0.0, %v307
    %309 = vmatprep.mubr.bf16.mxu0 %v226
    %310 = vmatmul.mubr.bf16.gmra.mrb[0].mxu0 %v102
    %v311 = vpop.f32.mrb[0].mxu0
    %v312 = vadd.f32 0.0, %v311
    %v313 = vpop.f32.mrb[0].mxu0
    %v314 = vadd.f32 0.0, %v313
    %v315 = vpop.f32.mrb[0].mxu0
    %v316 = vadd.f32 0.0, %v315
    %v317 = vpop.f32.mrb[0].mxu0
    %v318 = vadd.f32 0.0, %v317
    %319 = vmatprep.mubr.bf16.mxu0 %v229
    %320 = vmatmul.mubr.bf16.gmra.mrb[0].mxu0 %v104
    %v321 = vpop.f32.mrb[0].mxu0
    %v322 = vadd.f32 0.0, %v321
    %v323 = vpop.f32.mrb[0].mxu0
    %v324 = vadd.f32 0.0, %v323
    %v325 = vpop.f32.mrb[0].mxu0
    %v326 = vadd.f32 0.0, %v325
    %v327 = vpop.f32.mrb[0].mxu0
    %v328 = vadd.f32 0.0, %v327
    %329 = vmatprep.mubr.bf16.mxu0 %v232
    %330 = vmatmul.mubr.bf16.gmra.mrb[0].mxu0 %v106
    %v331 = vpop.f32.mrb[0].mxu0
    %v332 = vadd.f32 0.0, %v331
    %v333 = vpop.f32.mrb[0].mxu0
    %v334 = vadd.f32 0.0, %v333
    %v335 = vpop.f32.mrb[0].mxu0
    %v336 = vadd.f32 0.0, %v335
    %v337 = vpop.f32.mrb[0].mxu0
    %v338 = vadd.f32 0.0, %v337
    %339 = vmatprep.mubr.bf16.mxu0 %v235
    %340 = vmatmul.mubr.bf16.gmra.mrb[0].mxu0 %v108
    %v341 = vpop.f32.mrb[0].mxu0
    %v342 = vadd.f32 0.0, %v341
    %v343 = vpop.f32.mrb[0].mxu0
    %v344 = vadd.f32 0.0, %v343
    %v345 = vpop.f32.mrb[0].mxu0
    %v346 = vadd.f32 0.0, %v345
    %v347 = vpop.f32.mrb[0].mxu0
    %v348 = vadd.f32 0.0, %v347
    %349 = vmatprep.mubr.bf16.mxu0 %v238
    %350 = vmatmul.mubr.bf16.gmra.mrb[0].mxu0 %v110
    %v351 = vpop.f32.mrb[0].mxu0
    %v352 = vadd.f32 0.0, %v351
    %v353 = vpop.f32.mrb[0].mxu0
    %v354 = vadd.f32 0.0, %v353
    %v355 = vpop.f32.mrb[0].mxu0
    %v356 = vadd.f32 0.0, %v355
    %v357 = vpop.f32.mrb[0].mxu0
    %v358 = vadd.f32 0.0, %v357
    %359 = vdwg.mxu0
    %v360 = vmax.f32 %v282, 0.0
    %v361 = vmax.f32 %v286, 0.0
    %v362 = vmax.f32 %v292, 0.0
    %v363 = vmax.f32 %v296, 0.0
    %v364 = vmax.f32 %v302, 0.0
    %v365 = vmax.f32 %v306, 0.0
    %v366 = vmax.f32 %v312, 0.0
    %v367 = vmax.f32 %v316, 0.0
    %v368 = vmax.f32 %v322, 0.0
    %v369 = vmax.f32 %v326, 0.0
    %v370 = vmax.f32 %v332, 0.0
    %v371 = vmax.f32 %v336, 0.0
    %v372 = vmax.f32 %v342, 0.0
    %v373 = vmax.f32 %v346, 0.0
    %v374 = vmax.f32 %v352, 0.0
    %v375 = vmax.f32 %v356, 0.0
    %v376 = vmul.f32 %v282, %v282
    %v377 = vmul.f32 %v286, %v286
    %v378 = vmul.f32 %v292, %v292
    %v379 = vmul.f32 %v296, %v296
    %v380 = vmul.f32 %v302, %v302
    %v381 = vmul.f32 %v306, %v306
    %v382 = vmul.f32 %v312, %v312
    %v383 = vmul.f32 %v316, %v316
    %v384 = vmul.f32 %v322, %v322
    %v385 = vmul.f32 %v326, %v326
    %v386 = vmul.f32 %v332, %v332
    %v387 = vmul.f32 %v336, %v336
    %v388 = vmul.f32 %v342, %v342
    %v389 = vmul.f32 %v346, %v346
    %v390 = vmul.f32 %v352, %v352
    %v391 = vmul.f32 %v356, %v356
    %v392 = vmul.f32 %v284, %v284
    %v393 = vmul.f32 %v288, %v288
    %v394 = vmul.f32 %v294, %v294
    %v395 = vmul.f32 %v298, %v298
    %v396 = vmul.f32 %v304, %v304
    %v397 = vmul.f32 %v308, %v308
    %v398 = vmul.f32 %v314, %v314
    %v399 = vmul.f32 %v318, %v318
    %v400 = vmul.f32 %v324, %v324
    %v401 = vmul.f32 %v328, %v328
    %v402 = vmul.f32 %v334, %v334
    %v403 = vmul.f32 %v338, %v338
    %v404 = vmul.f32 %v344, %v344
    %v405 = vmul.f32 %v348, %v348
    %v406 = vmul.f32 %v354, %v354
    %v407 = vmul.f32 %v358, %v358
    %v408 = vadd.f32 %v376, %v392
    %v409 = vadd.f32 %v377, %v393
    %v410 = vadd.f32 %v378, %v394
    %v411 = vadd.f32 %v379, %v395
    %v412 = vadd.f32 %v380, %v396
    %v413 = vadd.f32 %v381, %v397
    %v414 = vadd.f32 %v382, %v398
    %v415 = vadd.f32 %v383, %v399
    %v416 = vadd.f32 %v384, %v400
    %v417 = vadd.f32 %v385, %v401
    %v418 = vadd.f32 %v386, %v402
    %v419 = vadd.f32 %v387, %v403
    %v420 = vadd.f32 %v388, %v404
    %v421 = vadd.f32 %v389, %v405
    %v422 = vadd.f32 %v390, %v406
    %v423 = vadd.f32 %v391, %v407
    %v424 = vrsqrt.pop %v408
    %v425 = vmul.f32 %v408, %v424
    %vm426 = vcmp.eq.f32.partialorder %v408, inf
    %v427 = vsel %vm426, %v408, %v425
    %vm428 = vcmp.eq.f32.partialorder %v408, 0.0
    %v429 = vand.u32 %v408, 2147483648
    %v430 = vsel %vm428, %v429, %v427
    %v431 = vrsqrt.pop %v409
    %v432 = vmul.f32 %v409, %v431
    %vm433 = vcmp.eq.f32.partialorder %v409, inf
    %v434 = vsel %vm433, %v409, %v432
    %vm435 = vcmp.eq.f32.partialorder %v409, 0.0
    %v436 = vand.u32 %v409, 2147483648
    %v437 = vsel %vm435, %v436, %v434
    %v438 = vrsqrt.pop %v410
    %v439 = vmul.f32 %v410, %v438
    %vm440 = vcmp.eq.f32.partialorder %v410, inf
    %v441 = vsel %vm440, %v410, %v439
    %vm442 = vcmp.eq.f32.partialorder %v410, 0.0
    %v443 = vand.u32 %v410, 2147483648
    %v444 = vsel %vm442, %v443, %v441
    %v445 = vrsqrt.pop %v411
    %v446 = vmul.f32 %v411, %v445
    %vm447 = vcmp.eq.f32.partialorder %v411, inf
    %v448 = vsel %vm447, %v411, %v446
    %vm449 = vcmp.eq.f32.partialorder %v411, 0.0
    %v450 = vand.u32 %v411, 2147483648
    %v451 = vsel %vm449, %v450, %v448
    %v452 = vrsqrt.pop %v412
    %v453 = vmul.f32 %v412, %v452
    %vm454 = vcmp.eq.f32.partialorder %v412, inf
    %v455 = vsel %vm454, %v412, %v453
    %vm456 = vcmp.eq.f32.partialorder %v412, 0.0
    %v457 = vand.u32 %v412, 2147483648
    %v458 = vsel %vm456, %v457, %v455
    %v459 = vrsqrt.pop %v413
    %v460 = vmul.f32 %v413, %v459
    %vm461 = vcmp.eq.f32.partialorder %v413, inf
    %v462 = vsel %vm461, %v413, %v460
    %vm463 = vcmp.eq.f32.partialorder %v413, 0.0
    %v464 = vand.u32 %v413, 2147483648
    %v465 = vsel %vm463, %v464, %v462
    %v466 = vrsqrt.pop %v414
    %v467 = vmul.f32 %v414, %v466
    %vm468 = vcmp.eq.f32.partialorder %v414, inf
    %v469 = vsel %vm468, %v414, %v467
    %vm470 = vcmp.eq.f32.partialorder %v414, 0.0
    %v471 = vand.u32 %v414, 2147483648
    %v472 = vsel %vm470, %v471, %v469
    %v473 = vrsqrt.pop %v415
    %v474 = vmul.f32 %v415, %v473
    %vm475 = vcmp.eq.f32.partialorder %v415, inf
    %v476 = vsel %vm475, %v415, %v474
    %vm477 = vcmp.eq.f32.partialorder %v415, 0.0
    %v478 = vand.u32 %v415, 2147483648
    %v479 = vsel %vm477, %v478, %v476
    %v480 = vrsqrt.pop %v416
    %v481 = vmul.f32 %v416, %v480
    %vm482 = vcmp.eq.f32.partialorder %v416, inf
    %v483 = vsel %vm482, %v416, %v481
    %vm484 = vcmp.eq.f32.partialorder %v416, 0.0
    %v485 = vand.u32 %v416, 2147483648
    %v486 = vsel %vm484, %v485, %v483
    %v487 = vrsqrt.pop %v417
    %v488 = vmul.f32 %v417, %v487
    %vm489 = vcmp.eq.f32.partialorder %v417, inf
    %v490 = vsel %vm489, %v417, %v488
    %vm491 = vcmp.eq.f32.partialorder %v417, 0.0
    %v492 = vand.u32 %v417, 2147483648
    %v493 = vsel %vm491, %v492, %v490
    %v494 = vrsqrt.pop %v418
    %v495 = vmul.f32 %v418, %v494
    %vm496 = vcmp.eq.f32.partialorder %v418, inf
    %v497 = vsel %vm496, %v418, %v495
    %vm498 = vcmp.eq.f32.partialorder %v418, 0.0
    %v499 = vand.u32 %v418, 2147483648
    %v500 = vsel %vm498, %v499, %v497
    %v501 = vrsqrt.pop %v419
    %v502 = vmul.f32 %v419, %v501
    %vm503 = vcmp.eq.f32.partialorder %v419, inf
    %v504 = vsel %vm503, %v419, %v502
    %vm505 = vcmp.eq.f32.partialorder %v419, 0.0
    %v506 = vand.u32 %v419, 2147483648
    %v507 = vsel %vm505, %v506, %v504
    %v508 = vrsqrt.pop %v420
    %v509 = vmul.f32 %v420, %v508
    %vm510 = vcmp.eq.f32.partialorder %v420, inf
    %v511 = vsel %vm510, %v420, %v509
    %vm512 = vcmp.eq.f32.partialorder %v420, 0.0
    %v513 = vand.u32 %v420, 2147483648
    %v514 = vsel %vm512, %v513, %v511
    %v515 = vrsqrt.pop %v421
    %v516 = vmul.f32 %v421, %v515
    %vm517 = vcmp.eq.f32.partialorder %v421, inf
    %v518 = vsel %vm517, %v421, %v516
    %vm519 = vcmp.eq.f32.partialorder %v421, 0.0
    %v520 = vand.u32 %v421, 2147483648
    %v521 = vsel %vm519, %v520, %v518
    %v522 = vrsqrt.pop %v422
    %v523 = vmul.f32 %v422, %v522
    %vm524 = vcmp.eq.f32.partialorder %v422, inf
    %v525 = vsel %vm524, %v422, %v523
    %vm526 = vcmp.eq.f32.partialorder %v422, 0.0
    %v527 = vand.u32 %v422, 2147483648
    %v528 = vsel %vm526, %v527, %v525
    %v529 = vrsqrt.pop %v423
    %v530 = vmul.f32 %v423, %v529
    %vm531 = vcmp.eq.f32.partialorder %v423, inf
    %v532 = vsel %vm531, %v423, %v530
    %vm533 = vcmp.eq.f32.partialorder %v423, 0.0
    %v534 = vand.u32 %v423, 2147483648
    %v535 = vsel %vm533, %v534, %v532
    %v536 = vlaneseq
    %v537 = vand.u32 %v536, 127
    %vm538 = vcmp.lt.s32.totalorder %v537, 8
    %v539 = vsel %vm538, %v360, %v430
    %v540 = vsel %vm538, %v361, %v437
    %v541 = vsel %vm538, %v362, %v444
    %v542 = vsel %vm538, %v363, %v451
    %v543 = vsel %vm538, %v364, %v458
    %v544 = vsel %vm538, %v365, %v465
    %v545 = vsel %vm538, %v366, %v472
    %v546 = vsel %vm538, %v367, %v479
    %v547 = vsel %vm538, %v368, %v486
    %v548 = vsel %vm538, %v369, %v493
    %v549 = vsel %vm538, %v370, %v500
    %v550 = vsel %vm538, %v371, %v507
    %v551 = vsel %vm538, %v372, %v514
    %v552 = vsel %vm538, %v373, %v521
    %v553 = vsel %vm538, %v374, %v528
    %v554 = vsel %vm538, %v375, %v535
    %555 = vst [vmem:[#allocation2] sm:$0xff] %v539
    %556 = vst [vmem:[#allocation2 + $0x8] sm:$0xff] %v540
    %557 = vst [vmem:[#allocation2 + $0x10] sm:$0xff] %v541
    %558 = vst [vmem:[#allocation2 + $0x18] sm:$0xff] %v542
    %559 = vst [vmem:[#allocation2 + $0x20] sm:$0xff] %v543
    %560 = vst [vmem:[#allocation2 + $0x28] sm:$0xff] %v544
    %561 = vst [vmem:[#allocation2 + $0x30] sm:$0xff] %v545
    %562 = vst [vmem:[#allocation2 + $0x38] sm:$0xff] %v546
    %563 = vst [vmem:[#allocation2 + $0x40] sm:$0xff] %v547
    %564 = vst [vmem:[#allocation2 + $0x48] sm:$0xff] %v548
    %565 = vst [vmem:[#allocation2 + $0x50] sm:$0xff] %v549
    %566 = vst [vmem:[#allocation2 + $0x58] sm:$0xff] %v550
    %567 = vst [vmem:[#allocation2 + $0x60] sm:$0xff] %v551
    %568 = vst [vmem:[#allocation2 + $0x68] sm:$0xff] %v552
    %569 = vst [vmem:[#allocation2 + $0x70] sm:$0xff] %v553
    %570 = vst [vmem:[#allocation2 + $0x78] sm:$0xff] %v554
    // Predicated region
    $region10: #{vone_block_forward.1} parent=1 // pred_check
      _
    $region11: #{vone_block_forward.1} parent=1 // pred_check_branch
      %572 = sbr.rel (0) target = $region13
    $region12: #{vone_block_forward.1} parent=1 // pred_region
      %s574 = ssub.s32 2048, 2048
      %575 = vsyncadd [#allocation3], %s574
      %s576 = sshll.u32 [#allocation2], 4
      %s577 = int_to_ptr.vmem [resolvable:$true] %s576
      %582 = dma.vmem_to_hbm [thread:$0]  %s577, 2048, %s2, [#allocation3], 128, 128, 8
    $region13: #{vone_block_forward.1} parent=1 // pred_fallthru
      _
    // Predicated region
    $region14: #{vone_block_forward.1} parent=1 // pred_check
      _
    $region15: #{vone_block_forward.1} parent=1 // pred_check_branch
      %584 = sbr.rel (0) target = $region17
    $region16: #{vone_block_forward.1} parent=1 // pred_region
      %585 = dma.done [#allocation3], 2048
    $region17: #{vone_block_forward.1} parent=1 // pred_fallthru
      _
    %586 = vsyncpa [#allocation3], 1

</llo_original>
